<compile_context>
chip_gen: v7x
topology: tpu7x:2x2x1
jax: 0.10.0
libtpu: 0.0.40
codegen_flags: <defaults>
</compile_context>

<pallas_src>
import functools

import jax
import jax.numpy as jnp
from jax.experimental import pallas as pl
from jax.experimental.pallas import tpu as pltpu

BN_EPS = 1e-5


def _round_up(x, m):
    return (x + m - 1) // m * m


def _vmem_limit_bytes():
    cap = 64 * 1024 * 1024
    try:
        info = pltpu.get_tpu_info()
        cap = int(getattr(info, "vmem_capacity_bytes", cap))
    except Exception:
        pass
    # 3/4 of physical, capped at 96 MiB: 48 MiB on v7x (64 MiB physical),
    # 96 MiB on v5e/v6e (128 MiB physical) -- well above the 16/32 MiB
    # default scoped limits, with headroom for compiler scratch.
    return max(32 * 1024 * 1024, min(96 * 1024 * 1024, (cap * 3) // 4))


_VMEM_LIMIT = _vmem_limit_bytes()


def _pick_tile_m(M, KC, Cout):
    """M-tile for the conv matmul.

    Budget = scoped-VMEM limit minus double-buffered resident bf16 weights
    minus slack.  Streamed per-row cost covers the bf16 patch block and the
    bf16 conv-output block (x2 pipeline buffers each).  Tiles are multiples
    of 256 (>=16 for tiny layers) and capped so the "parallel" grid axis has
    at least 2 steps.
    """
    if M <= 256:
        return max(16, _round_up(M, 16))
    weight_bytes = 2 * (2 * KC * Cout)             # 2 buffers x bf16 weights
    slack = 4 * 1024 * 1024
    stream_budget = max(_VMEM_LIMIT - weight_bytes - slack, 4 * 1024 * 1024)
    row_bytes = 2 * (2 * KC + 2 * Cout)            # 2 buffers x (patches + y)
    t = min(stream_budget // row_bytes, 2048)
    t = max((t // 256) * 256, 256)
    t = min(t, _round_up((M + 1) // 2, 256))       # >= 2 grid steps
    return t


# --------------------------------------------------------------------------
# Pallas kernels
# --------------------------------------------------------------------------
def _conv_kernel(p_ref, w_ref, y_ref, s_ref, ss_ref):
    """One M-tile of the im2col matmul (bf16 x bf16 -> f32 on the MXU).
    Stores the conv output tile in bf16 plus f32 partial sum / sum-of-squares
    (taken from the f32 accumulator) for the global BatchNorm statistics."""
    acc = jnp.dot(p_ref[...], w_ref[...], preferred_element_type=jnp.float32)
    y_ref[...] = acc.astype(y_ref.dtype)
    s_ref[...] = jnp.sum(acc, axis=0, keepdims=True)[None]       # (1,1,Cout)
    ss_ref[...] = jnp.sum(acc * acc, axis=0, keepdims=True)[None]


def _epilogue_kernel(y_ref, sc_ref, sh_ref, *rest, relu, has_residual):
    """Pure FMA epilogue on one lane-dense M-tile:
    out = relu?(y*scale + shift (+ residual)).  scale/shift precomputed."""
    if has_residual:
        r_ref, o_ref = rest
    else:
        (o_ref,) = rest
    y = y_ref[...].astype(jnp.float32) * sc_ref[...] + sh_ref[...]
    if has_residual:
        y = y + r_ref[...].astype(jnp.float32)
    if relu:
        y = jnp.maximum(y, 0.0)
    o_ref[...] = y.astype(o_ref.dtype)


def _avgpool_kernel(x_ref, o_ref, *, inv_hw):
    # Global average pool for one batch element: VPU/XLU reduction over H*W.
    o_ref[...] = jnp.sum(x_ref[...].astype(jnp.float32), axis=1,
                         keepdims=True) * inv_hw


# --------------------------------------------------------------------------
# Conv + BN (+ residual) (+ ReLU) wrapper
# --------------------------------------------------------------------------
def conv_bn(x, w, gamma, beta, *, stride, relu, residual=None):
    """x: (N, H, W, Cin) NHWC. w: (kh, kw, Cin, Cout) HWIO.
    Returns relu?(BN(conv(x)) [+ residual]) as (N, Hout, Wout, Cout) bf16."""
    N, H, W, Cin = x.shape
    kh, kw, _, Cout = w.shape
    pad = (kh - 1) // 2                      # 1 for 3x3, 0 for 1x1
    Hout = (H + 2 * pad - kh) // stride + 1
    Wout = (W + 2 * pad - kw) // stride + 1
    K = kh * kw
    KC = K * Cin
    M = N * Hout * Wout

    tile_m = _pick_tile_m(M, KC, Cout)
    M_pad = _round_up(M, tile_m)
    n_tiles = M_pad // tile_m

    # im2col in bf16: taps concatenated along channels so the full K*Cin
    # contraction is one deep matmul.  Padded rows are zero, so they add
    # nothing to the BN partial sums (stats divide by the true M).
    # NOTE: inputs are cast to bf16 (MXU-native) -- a deliberate accuracy/
    # perf trade vs. the f32 PyTorch reference.
    # TODO(synk): assemble the (tile_m, K*Cin) patch tile inside the kernel
    # from a halo/Element-indexed NHWC block to remove the K-fold HBM
    # duplication; kept wrapper-side here because the in-kernel
    # (H,W,C)->(H*W,C) relayouts are not reliably lowered by Mosaic for the
    # small / odd spatial extents (4x4, 2x2) this network produces.
    xb = x.astype(jnp.bfloat16)
    xp = jnp.pad(xb, ((0, 0), (pad, pad), (pad, pad), (0, 0)))
    cols = []
    for i in range(kh):
        for j in range(kw):
            sl = xp[:, i:i + stride * (Hout - 1) + 1:stride,
                    j:j + stride * (Wout - 1) + 1:stride, :]
            cols.append(sl.reshape(M, Cin))
    patches = jnp.concatenate(cols, axis=1) if K > 1 else cols[0]
    if M_pad != M:
        patches = jnp.pad(patches, ((0, M_pad - M), (0, 0)))

    w_flat = w.reshape(KC, Cout).astype(jnp.bfloat16)

    cost1 = pl.CostEstimate(
        flops=2 * M_pad * KC * Cout, transcendentals=0,
        bytes_accessed=2 * M_pad * KC + 2 * KC * Cout + 2 * M_pad * Cout
        + 8 * n_tiles * Cout)

    # Pass 1: tiled conv matmul (bf16 output) + per-tile partial BN stats.
    y, sums, sumsq = pl.pallas_call(
        _conv_kernel,
        out_shape=(jax.ShapeDtypeStruct((M_pad, Cout), jnp.bfloat16),
                   jax.ShapeDtypeStruct((n_tiles, 1, Cout), jnp.float32),
                   jax.ShapeDtypeStruct((n_tiles, 1, Cout), jnp.float32)),
        grid=(n_tiles,),
        in_specs=[pl.BlockSpec((tile_m, KC), lambda i: (i, 0)),
                  pl.BlockSpec((KC, Cout), lambda i: (0, 0))],
        out_specs=(pl.BlockSpec((tile_m, Cout), lambda i: (i, 0)),
                   pl.BlockSpec((1, 1, Cout), lambda i: (i, 0, 0)),
                   pl.BlockSpec((1, 1, Cout), lambda i: (i, 0, 0))),
        compiler_params=pltpu.CompilerParams(
            dimension_semantics=("parallel",),
            vmem_limit_bytes=_VMEM_LIMIT),
        cost_estimate=cost1,
    )(patches, w_flat)

    # Finalize GLOBAL BN statistics once (tiny jnp reduction) -> per-channel
    # scale/shift for the epilogue.
    # TODO(synk): E[x^2]-mean^2 in f32 can cancel for extreme activation
    # statistics; a per-tile-centered (Welford-combine) variant would be
    # numerically safer but needs per-tile valid-row counts for padded tiles.
    inv_m = 1.0 / M
    total = jnp.sum(sums, axis=0)                       # (1, Cout) f32
    total_sq = jnp.sum(sumsq, axis=0)                   # (1, Cout) f32
    mean = total * inv_m
    var = jnp.maximum(total_sq * inv_m - mean * mean, 0.0)
    scale = gamma.reshape(1, Cout).astype(jnp.float32) * jax.lax.rsqrt(var + BN_EPS)
    shift = beta.reshape(1, Cout).astype(jnp.float32) - mean * scale

    # Lane packing: for Cout < 128 view the row-major (M_pad, Cout) arrays as
    # (M_pad/p, Cout*p) so the epilogue's loads/stores are lane-dense.
    p_pack = 128 // Cout if Cout < 128 else 1
    C_eff = Cout * p_pack
    M_eff = M_pad // p_pack
    tile_eff = tile_m // p_pack

    y_eff = y.reshape(M_eff, C_eff)
    scale_eff = jnp.tile(scale, (1, p_pack))
    shift_eff = jnp.tile(shift, (1, p_pack))

    has_residual = residual is not None
    inputs = [y_eff, scale_eff, shift_eff]
    in_specs = [
        pl.BlockSpec((tile_eff, C_eff), lambda i: (i, 0)),
        pl.BlockSpec((1, C_eff), lambda i: (0, 0)),
        pl.BlockSpec((1, C_eff), lambda i: (0, 0)),
    ]
    if has_residual:
        r = residual.reshape(M, Cout).astype(jnp.bfloat16)
        if M_pad != M:
            r = jnp.pad(r, ((0, M_pad - M), (0, 0)))
        inputs.append(r.reshape(M_eff, C_eff))
        in_specs.append(pl.BlockSpec((tile_eff, C_eff), lambda i: (i, 0)))

    cost2 = pl.CostEstimate(
        flops=(4 if has_residual else 3) * M_eff * C_eff, transcendentals=0,
        bytes_accessed=(3 if has_residual else 2) * 2 * M_eff * C_eff
        + 2 * M_eff * C_eff)

    # Pass 2: tiled FMA (+ residual) (+ ReLU) epilogue, lane-dense blocks.
    kernel = functools.partial(_epilogue_kernel, relu=relu,
                               has_residual=has_residual)
    out = pl.pallas_call(
        kernel,
        out_shape=jax.ShapeDtypeStruct((M_eff, C_eff), jnp.bfloat16),
        grid=(n_tiles,),
        in_specs=in_specs,
        out_specs=pl.BlockSpec((tile_eff, C_eff), lambda i: (i, 0)),
        compiler_params=pltpu.CompilerParams(
            dimension_semantics=("parallel",),
            vmem_limit_bytes=_VMEM_LIMIT),
        cost_estimate=cost2,
    )(*inputs)

    out = out.reshape(M_pad, Cout)
    if M_pad != M:
        out = out[:M]
    return out.reshape(N, Hout, Wout, Cout)


def global_avgpool(x):
    """x: (N, H, W, C) -> (N, C)  (== flatten(AdaptiveAvgPool2d((1,1))(x), 1))."""
    N, H, W, C = x.shape
    HW = H * W
    xf = x.reshape(N, HW, C)
    out = pl.pallas_call(
        functools.partial(_avgpool_kernel, inv_hw=1.0 / HW),
        out_shape=jax.ShapeDtypeStruct((N, 1, C), jnp.float32),
        grid=(N,),
        in_specs=[pl.BlockSpec((1, HW, C), lambda i: (i, 0, 0))],
        out_specs=pl.BlockSpec((1, 1, C), lambda i: (i, 0, 0)),
        compiler_params=pltpu.CompilerParams(
            dimension_semantics=("parallel",),
            vmem_limit_bytes=_VMEM_LIMIT),
    )(xf)
    return out.reshape(N, C)


# --------------------------------------------------------------------------
# Parameter init (deterministic, mirrors the module's __init__)
# --------------------------------------------------------------------------
def _kaiming_conv(key, cin, cout, k):
    # kaiming_normal_(mode='fan_out', nonlinearity='relu'):
    # std = sqrt(2 / fan_out), fan_out = cout * k * k.   Stored as HWIO.
    std = (2.0 / (cout * k * k)) ** 0.5
    return std * jax.random.normal(key, (k, k, cin, cout), jnp.float32)


def init_resnet_params(key, num_blocks=(2, 2, 2, 2), in_channel=3):
    keys = iter(jax.random.split(key, 64))
    params = {
        "stem": dict(w=_kaiming_conv(next(keys), in_channel, 64, 3),
                     g=jnp.ones((64,), jnp.float32),
                     b=jnp.zeros((64,), jnp.float32)),
        "layers": [],
    }
    in_planes = 64
    for planes, nb, stride0 in zip((64, 128, 256, 512), num_blocks, (1, 2, 2, 2)):
        blocks = []
        for s in [stride0] + [1] * (nb - 1):
            blk = dict(
                w1=_kaiming_conv(next(keys), in_planes, planes, 3),
                g1=jnp.ones((planes,), jnp.float32),
                b1=jnp.zeros((planes,), jnp.float32),
                w2=_kaiming_conv(next(keys), planes, planes, 3),
                g2=jnp.ones((planes,), jnp.float32),
                b2=jnp.zeros((planes,), jnp.float32),
                stride=s,
            )
            if s != 1 or in_planes != planes:
                blk["ws"] = _kaiming_conv(next(keys), in_planes, planes, 1)
                blk["gs"] = jnp.ones((planes,), jnp.float32)
                blk["bs"] = jnp.zeros((planes,), jnp.float32)
            blocks.append(blk)
            in_planes = planes
        params["layers"].append(blocks)
    return params


# --------------------------------------------------------------------------
# Forward pass
# --------------------------------------------------------------------------
def basic_block_forward(x, blk):
    out = conv_bn(x, blk["w1"], blk["g1"], blk["b1"],
                  stride=blk["stride"], relu=True)
    if "ws" in blk:
        sc = conv_bn(x, blk["ws"], blk["gs"], blk["bs"],
                     stride=blk["stride"], relu=False)
    else:
        sc = x
    # out = relu(BN2(conv2(out)) + shortcut(x)) — residual fused in epilogue.
    out = conv_bn(out, blk["w2"], blk["g2"], blk["b2"],
                  stride=1, relu=True, residual=sc)
    return out


def resnet_forward(x_nchw, params):
    # PyTorch gives NCHW; convert to NHWC so channels map to the lane axis.
    x = jnp.transpose(x_nchw, (0, 2, 3, 1)).astype(jnp.float32)
    x = conv_bn(x, params["stem"]["w"], params["stem"]["g"], params["stem"]["b"],
                stride=1, relu=True)
    for layer in params["layers"]:
        for blk in layer:
            x = basic_block_forward(x, blk)
    return global_avgpool(x)            # (N, 512) f32


# --------------------------------------------------------------------------
if __name__ == "__main__":
    key = jax.random.PRNGKey(0)
    pkey, xkey = jax.random.split(key)

    # Small deterministic example: batch=2, in_channel=4, 16x16 spatial (NCHW).
    in_channel = 4
    params = init_resnet_params(pkey, num_blocks=(2, 2, 2, 2),
                                in_channel=in_channel)
    x = jax.random.normal(xkey, (2, in_channel, 16, 16), jnp.float32)

    out = resnet_forward(x, params)
    out = jax.block_until_ready(out)
    assert out.shape == (2, 512), out.shape
    assert bool(jnp.all(jnp.isfinite(out)))
    print("KERNEL_OK")
</pallas_src>

<mosaic_0001>
module attributes {stable_mosaic.version = 11 : i64} {
  func.func @_conv_kernel(%arg0: i32, %arg1: memref<256x36xbf16, #tpu.memory_space<vmem>>, %arg2: memref<36x64xbf16, #tpu.memory_space<vmem>>, %arg3: memref<256x64xbf16, #tpu.memory_space<vmem>>, %arg4: memref<1x1x64xf32, #tpu.memory_space<vmem>>, %arg5: memref<1x1x64xf32, #tpu.memory_space<vmem>>) attributes {dimension_semantics = [#tpu.dimension_semantics<parallel>], iteration_bounds = array<i64: 2>, scalar_prefetch = 0 : i64, scratch_operands = 0 : i64, tpu.core_type = #tpu.core_type<tc>, window_params = [{transform_indices = @transform_0, window_bounds = array<i64: 256, 36>}, {pipeline_mode = #tpu.pipeline_mode<synchronous>, transform_indices = @transform_1, window_bounds = array<i64: 36, 64>}, {transform_indices = @transform_2, window_bounds = array<i64: 256, 64>}, {transform_indices = @transform_3, window_bounds = array<i64: 1, 1, 64>}, {transform_indices = @transform_4, window_bounds = array<i64: 1, 1, 64>}]} {
    %c0 = arith.constant 0 : index
    %c0_0 = arith.constant 0 : index
    %0 = vector.load %arg1[%c0, %c0_0] : memref<256x36xbf16, #tpu.memory_space<vmem>>, vector<256x36xbf16>
    %c0_1 = arith.constant 0 : index
    %c0_2 = arith.constant 0 : index
    %1 = vector.load %arg2[%c0_1, %c0_2] : memref<36x64xbf16, #tpu.memory_space<vmem>>, vector<36x64xbf16>
    %cst = arith.constant dense<0.000000e+00> : vector<256x64xf32>
    %2 = tpu.matmul %0, %1, %cst {dimension_numbers = #tpu.dot_dimension_numbers<[1], [0], [0], [1], [0, 0, 1, 1], [], []>} : vector<256x36xbf16>, vector<36x64xbf16>, vector<256x64xf32> -> vector<256x64xf32>
    %3 = arith.truncf %2 : vector<256x64xf32> to vector<256x64xbf16>
    %c0_3 = arith.constant 0 : index
    %c0_4 = arith.constant 0 : index
    %4 = vector.load %arg3[%c0_3, %c0_4] : memref<256x64xbf16, #tpu.memory_space<vmem>>, vector<256x64xbf16>
    tpu.vector_store %arg3[%c0_3, %c0_4], %3 {strides = array<i32>} : memref<256x64xbf16, #tpu.memory_space<vmem>>, vector<256x64xbf16>,
    %cst_5 = arith.constant dense<0.000000e+00> : vector<64xf32>
    %5 = vector.multi_reduction <add>, %2, %cst_5 [0] : vector<256x64xf32> to vector<64xf32>
    %6 = vector.shape_cast %5 : vector<64xf32> to vector<1x64xf32>
    %7 = vector.shape_cast %6 : vector<1x64xf32> to vector<1x1x64xf32>
    %c0_6 = arith.constant 0 : index
    %c0_7 = arith.constant 0 : index
    %c0_8 = arith.constant 0 : index
    %8 = vector.load %arg4[%c0_6, %c0_7, %c0_8] : memref<1x1x64xf32, #tpu.memory_space<vmem>>, vector<1x1x64xf32>
    tpu.vector_store %arg4[%c0_6, %c0_7, %c0_8], %7 {strides = array<i32>} : memref<1x1x64xf32, #tpu.memory_space<vmem>>, vector<1x1x64xf32>,
    %9 = arith.mulf %2, %2 : vector<256x64xf32>
    %cst_9 = arith.constant dense<0.000000e+00> : vector<64xf32>
    %10 = vector.multi_reduction <add>, %9, %cst_9 [0] : vector<256x64xf32> to vector<64xf32>
    %11 = vector.shape_cast %10 : vector<64xf32> to vector<1x64xf32>
    %12 = vector.shape_cast %11 : vector<1x64xf32> to vector<1x1x64xf32>
    %c0_10 = arith.constant 0 : index
    %c0_11 = arith.constant 0 : index
    %c0_12 = arith.constant 0 : index
    %13 = vector.load %arg5[%c0_10, %c0_11, %c0_12] : memref<1x1x64xf32, #tpu.memory_space<vmem>>, vector<1x1x64xf32>
    tpu.vector_store %arg5[%c0_10, %c0_11, %c0_12], %12 {strides = array<i32>} : memref<1x1x64xf32, #tpu.memory_space<vmem>>, vector<1x1x64xf32>,
    return
  }
  func.func @transform_0(%arg0: i32) -> (i32, i32) {
    %c0_i32 = arith.constant 0 : i32
    %c0_i32_0 = arith.constant 0 : i32
    return %arg0, %c0_i32 : i32, i32
  }
  func.func @transform_1(%arg0: i32) -> (i32, i32) {
    %c0_i32 = arith.constant 0 : i32
    %c0_i32_0 = arith.constant 0 : i32
    %c0_i32_1 = arith.constant 0 : i32
    return %c0_i32, %c0_i32_0 : i32, i32
  }
  func.func @transform_2(%arg0: i32) -> (i32, i32) {
    %c0_i32 = arith.constant 0 : i32
    %c0_i32_0 = arith.constant 0 : i32
    return %arg0, %c0_i32 : i32, i32
  }
  func.func @transform_3(%arg0: i32) -> (i32, i32, i32) {
    %c0_i32 = arith.constant 0 : i32
    %c0_i32_0 = arith.constant 0 : i32
    %c0_i32_1 = arith.constant 0 : i32
    return %arg0, %c0_i32, %c0_i32_0 : i32, i32, i32
  }
  func.func @transform_4(%arg0: i32) -> (i32, i32, i32) {
    %c0_i32 = arith.constant 0 : i32
    %c0_i32_0 = arith.constant 0 : i32
    %c0_i32_1 = arith.constant 0 : i32
    return %arg0, %c0_i32, %c0_i32_0 : i32, i32, i32
  }
}

</mosaic_0001>

<llo_original>
// kernel: tpu_custom_call.1
$region0: #{tpu_custom_call.1}
  #allocation0 [shape = 'u32[]', space=smem, size = 0x4, offset = 0x4, fixed_abs, tag = 'smem constant byte address 0x4 - core index']
  #allocation1 [shape = 'u32[144,128]{1,0:T(1,128)}', space=vmem, size = 0x12000, scoped, tag = 'internal scratch']
  %s0 = inlined_call_operand.vmem [shape: bf16[512,36], index: 0, kind: input, shape index: {}]
  %s1 = inlined_call_operand.vmem [shape: bf16[36,64], index: 1, kind: input, shape index: {}]
  %s2 = inlined_call_operand.vmem [shape: bf16[512,64], index: 2, kind: output, shape index: {0}]
  %s3 = inlined_call_operand.hbm [shape: f32[2,1,64], index: 3, kind: output, shape index: {1}]
  %s4 = inlined_call_operand.hbm [shape: f32[2,1,64], index: 4, kind: output, shape index: {2}]
  %5 = xla_tuple %s2, %s3, %s4
  %s6 = sld [smem:[#allocation0]]
  $region57: #{tpu_custom_call.1} parent=0
    _
  %s8 = ssub.s32 1, %s6
  %s9 = scalar_select 0, %s8, %s6
  $region1: #{tpu_custom_call.1} parent=0
    #allocation2 [shape = 'u8[1024]{0}', space=vmem, size = 0x400, scoped, tag = 'output window, operand 1']
    #allocation3 [shape = 's32[2]{0}', space=sflag, size = 0x8, scoped, tag = 'scoped memory for tpu_custom_call.1']
    #allocation4 [shape = 'u8[1024]{0}', space=vmem, size = 0x400, scoped, tag = 'output window, operand 2']
    #allocation5 [shape = 's32[2]{0}', space=sflag, size = 0x8, scoped, tag = 'scoped memory for tpu_custom_call.1']
    %10 = vsyncpa [#allocation3], 0
    %s11 = scalar_lea.sflag [#allocation3], 1
    %12 = vsyncpa %s11, 0
    %13 = vsyncpa [#allocation5], 0
    %s14 = scalar_lea.sflag [#allocation5], 1
    %15 = vsyncpa %s14, 0
    loop: start=0, step=1, limit=4
    $region2: #{tpu_custom_call.1} parent=1 // loop_pre_header
      _
    $region3: #{tpu_custom_call.1} parent=1 // loop_header
      %s17 = sphi 0, %s21
      %p18 = scmp.ge.s32.totalorder %s17, 4
      %s27 = sphi 0, %s29
      %s30 = sphi 0, %s27
      %s31 = sphi 0, %s30
      %s47 = sphi 0, %s31
      %s51 = sphi 0, %s51
      %s53 = sphi 0, %s51
      %s54 = sphi 0, %s53
      %s68 = sphi 0, %s54
      %s74 = sphi 0, %s76
      %s77 = sphi 0, %s74
      %s78 = sphi 0, %s77
      %s94 = sphi 0, %s78
      %s100 = sphi 0, %s102
      %s103 = sphi 0, %s100
      %s104 = sphi 0, %s103
      %s120 = sphi 0, %s104
      %s126 = sphi 0, %s128
      %s129 = sphi 0, %s126
      %s130 = sphi 0, %s129
      %s146 = sphi 0, %s130
    $region4: #{tpu_custom_call.1} parent=1 // loop_header_branch
      %20 = sbr.rel (%p18) target = $region8
    $region5: #{tpu_custom_call.1} parent=1 // loop_body
      %s22 = ssub.s32 %s17, 1
      %s23 = ssub.s32 %s17, 2
      %s24 = sadd.s32 %s17, 1
      %s25 = ssub.s32 %s17, %s24
      %p26 = scmp.eq.s32.totalorder %s25, 0
      %s28 = sadd.s32 %s27, 1
      %s29 = scalar_select %p26, %s27, %s28
      %p32 = pneg %p26
      %p33 = scmp.eq.s32.totalorder %s17, 1
      %p34 = por %p32, %p33
      %p35 = scmp.ne.s32.totalorder %s27, %s30
      %p36 = scmp.eq.s32.totalorder %s17, 0
      %p37 = por %p35, %p36
      %p38 = scmp.ne.s32.totalorder %s27, %s30
      %p39 = scmp.eq.s32.totalorder %s22, 1
      %p40 = por %p38, %p39
      %p41 = scmp.ne.s32.totalorder %s30, %s31
      %p42 = scmp.eq.s32.totalorder %s22, 0
      %p43 = por %p41, %p42
      %p44 = scmp.ne.s32.totalorder %s30, %s31
      %p45 = scmp.eq.s32.totalorder %s23, 1
      %p46 = por %p44, %p45
      %p48 = scmp.ne.s32.totalorder %s31, %s47
      %p49 = scmp.eq.s32.totalorder %s23, 0
      %p50 = por %p48, %p49
      %s52 = sadd.s32 %s51, 1
      %p55 = scmp.eq.s32.totalorder %s17, 1
      %p56 = scmp.ne.s32.totalorder %s51, %s53
      %p57 = scmp.eq.s32.totalorder %s17, 0
      %p58 = por %p56, %p57
      %p59 = scmp.ne.s32.totalorder %s51, %s53
      %p60 = scmp.eq.s32.totalorder %s22, 1
      %p61 = por %p59, %p60
      %p62 = scmp.ne.s32.totalorder %s53, %s54
      %p63 = scmp.eq.s32.totalorder %s22, 0
      %p64 = por %p62, %p63
      %p65 = scmp.ne.s32.totalorder %s53, %s54
      %p66 = scmp.eq.s32.totalorder %s23, 1
      %p67 = por %p65, %p66
      %p69 = scmp.ne.s32.totalorder %s54, %s68
      %p70 = scmp.eq.s32.totalorder %s23, 0
      %p71 = por %p69, %p70
      %s72 = ssub.s32 %s17, %s24
      %p73 = scmp.eq.s32.totalorder %s72, 0
      %s75 = sadd.s32 %s74, 1
      %s76 = scalar_select %p73, %s74, %s75
      %p79 = pneg %p73
      %p80 = scmp.eq.s32.totalorder %s17, 1
      %p81 = por %p79, %p80
      %p82 = scmp.ne.s32.totalorder %s74, %s77
      %p83 = scmp.eq.s32.totalorder %s17, 0
      %p84 = por %p82, %p83
      %p85 = scmp.ne.s32.totalorder %s74, %s77
      %p86 = scmp.eq.s32.totalorder %s22, 1
      %p87 = por %p85, %p86
      %p88 = scmp.ne.s32.totalorder %s77, %s78
      %p89 = scmp.eq.s32.totalorder %s22, 0
      %p90 = por %p88, %p89
      %p91 = scmp.ne.s32.totalorder %s77, %s78
      %p92 = scmp.eq.s32.totalorder %s23, 1
      %p93 = por %p91, %p92
      %p95 = scmp.ne.s32.totalorder %s78, %s94
      %p96 = scmp.eq.s32.totalorder %s23, 0
      %p97 = por %p95, %p96
      %s98 = ssub.s32 %s17, %s24
      %p99 = scmp.eq.s32.totalorder %s98, 0
      %s101 = sadd.s32 %s100, 1
      %s102 = scalar_select %p99, %s100, %s101
      %p105 = pneg %p99
      %p106 = scmp.eq.s32.totalorder %s17, 1
      %p107 = por %p105, %p106
      %p108 = scmp.ne.s32.totalorder %s100, %s103
      %p109 = scmp.eq.s32.totalorder %s17, 0
      %p110 = por %p108, %p109
      %p111 = scmp.ne.s32.totalorder %s100, %s103
      %p112 = scmp.eq.s32.totalorder %s22, 1
      %p113 = por %p111, %p112
      %p114 = scmp.ne.s32.totalorder %s103, %s104
      %p115 = scmp.eq.s32.totalorder %s22, 0
      %p116 = por %p114, %p115
      %p117 = scmp.ne.s32.totalorder %s103, %s104
      %p118 = scmp.eq.s32.totalorder %s23, 1
      %p119 = por %p117, %p118
      %p121 = scmp.ne.s32.totalorder %s104, %s120
      %p122 = scmp.eq.s32.totalorder %s23, 0
      %p123 = por %p121, %p122
      %s124 = ssub.s32 %s17, %s24
      %p125 = scmp.eq.s32.totalorder %s124, 0
      %s127 = sadd.s32 %s126, 1
      %s128 = scalar_select %p125, %s126, %s127
      %p131 = pneg %p125
      %p132 = scmp.eq.s32.totalorder %s17, 1
      %p133 = por %p131, %p132
      %p134 = scmp.ne.s32.totalorder %s126, %s129
      %p135 = scmp.eq.s32.totalorder %s17, 0
      %p136 = por %p134, %p135
      %p137 = scmp.ne.s32.totalorder %s126, %s129
      %p138 = scmp.eq.s32.totalorder %s22, 1
      %p139 = por %p137, %p138
      %p140 = scmp.ne.s32.totalorder %s129, %s130
      %p141 = scmp.eq.s32.totalorder %s22, 0
      %p142 = por %p140, %p141
      %p143 = scmp.ne.s32.totalorder %s129, %s130
      %p144 = scmp.eq.s32.totalorder %s23, 1
      %p145 = por %p143, %p144
      %p147 = scmp.ne.s32.totalorder %s130, %s146
      %p148 = scmp.eq.s32.totalorder %s23, 0
      %p149 = por %p147, %p148
      %p150 = scmp.le.s32.totalorder 1, %s17
      %p151 = scmp.lt.s32.totalorder %s17, 3
      %p152 = pnand %p150, %p151
      %p153 = pneg %p152
      // Predicated region
      $region9: #{tpu_custom_call.1} parent=5 // pred_check
        _
      $region10: #{tpu_custom_call.1} parent=5 // pred_check_branch
        %155 = sbr.rel (%p152) target = $region12
      $region11: #{tpu_custom_call.1} parent=5 // pred_region
        %s156 = ssub.s32 %s17, 1
        // Predicated region
        $region13: #{tpu_custom_call.1} parent=11 // pred_check
          %p157 = pneg %p64
        $region14: #{tpu_custom_call.1} parent=11 // pred_check_branch
          %159 = sbr.rel (%p157) target = $region16
        $region15: #{tpu_custom_call.1} parent=11 // pred_region
          _
        $region16: #{tpu_custom_call.1} parent=11 // pred_fallthru
          _
      $region12: #{tpu_custom_call.1} parent=5 // pred_fallthru
        _
      %p160 = scmp.lt.s32.totalorder %s17, 2
      // Predicated region
      $region17: #{tpu_custom_call.1} parent=5 // pred_check
        %p161 = pneg %p160
      $region18: #{tpu_custom_call.1} parent=5 // pred_check_branch
        %163 = sbr.rel (%p161) target = $region20
      $region19: #{tpu_custom_call.1} parent=5 // pred_region
        // Predicated region
        $region21: #{tpu_custom_call.1} parent=19 // pred_check
          %p164 = pneg %p37
        $region22: #{tpu_custom_call.1} parent=19 // pred_check_branch
          %166 = sbr.rel (%p164) target = $region24
        $region23: #{tpu_custom_call.1} parent=19 // pred_region
          %s167 = smul.u32 32, %s17
          %p168 = scmp.lt.s32.totalorder %s167, 63
          %s169 = scalar_select %p168, %s167, 63
          %s170 = smul.addr %s169, 4
          %s171 = scalar_lea.vmem %s0, %s170
          %s172 = smul.u32 32, %s17
        $region24: #{tpu_custom_call.1} parent=19 // pred_fallthru
          _
      $region20: #{tpu_custom_call.1} parent=5 // pred_fallthru
        _
      %p173 = scmp.le.s32.totalorder 1, %s17
      %p174 = scmp.lt.s32.totalorder %s17, 3
      %p175 = pnand %p173, %p174
      %p176 = pneg %p175
      // Predicated region
      $region25: #{tpu_custom_call.1} parent=5 // pred_check
        _
      $region26: #{tpu_custom_call.1} parent=5 // pred_check_branch
        %178 = sbr.rel (%p175) target = $region28
      $region27: #{tpu_custom_call.1} parent=5 // pred_region
        %s179 = ssub.s32 %s17, 1
        %s180 = smul.u32 32, %s22
        %p181 = scmp.lt.s32.totalorder %s180, 63
        %s182 = scalar_select %p181, %s180, 63
        %s183 = smul.addr %s182, 4
        %s184 = scalar_lea.vmem %s0, %s183
        %p185 = pneg %p43
        %p186 = pneg %p40
        %p187 = pneg %p64
        %p188 = pneg %p61
        %p189 = pneg %p90
        %p190 = pneg %p87
        %s191 = smul.u32 32, %s22
        %p192 = scmp.lt.s32.totalorder %s191, 63
        %s193 = scalar_select %p192, %s191, 63
        %s194 = smul.addr %s193, 4
        %s195 = scalar_lea.vmem %s2, %s194
        %p196 = pneg %p116
        %p197 = pneg %p113
        %s198 = sand.u32 %s103, 1
        %s199 = scalar_lea.sflag [#allocation3], %s198
        %s200 = sand.u32 %s103, 1
        %s201 = scalar_lea.vmem [#allocation2], %s200
        %p202 = pneg %p142
        %p203 = pneg %p139
        %s204 = sand.u32 %s129, 1
        %s205 = scalar_lea.sflag [#allocation5], %s204
        %s206 = sand.u32 %s129, 1
        %s207 = scalar_lea.vmem [#allocation4], %s206
        %s208 = smul.u32 32, %s22
        %p209 = scmp.lt.s32.totalorder %s208, 63
        %s210 = scalar_select %p209, %s208, 63
        %s211 = smul.addr %s210, 4
        %s212 = scalar_lea.vmem %s0, %s211
        %s213 = smul.u32 32, %s22
        %s214 = smul.u32 32, %s22
        %p215 = scmp.lt.s32.totalorder %s214, 63
        %s216 = scalar_select %p215, %s214, 63
        %s217 = smul.addr %s216, 4
        %s218 = scalar_lea.vmem %s2, %s217
        %s219 = smul.u32 32, %s22
        %v221 = vld [vmem:[%s212] sm:$0xf]
        %v222 = vld [vmem:[%s212 + $0x4] sm:$0xf]
        %v223 = vld [vmem:[%s212 + $0x8] sm:$0xf]
        %v224 = vld [vmem:[%s212 + $0xc] sm:$0xf]
        %v225 = vld [vmem:[%s212 + $0x10] sm:$0xf]
        %v226 = vld [vmem:[%s212 + $0x14] sm:$0xf]
        %v227 = vld [vmem:[%s212 + $0x18] sm:$0xf]
        %v228 = vld [vmem:[%s212 + $0x1c] sm:$0xf]
        %v229 = vld [vmem:[%s212 + $0x20] sm:$0xf]
        %v230 = vld [vmem:[%s212 + $0x24] sm:$0xf]
        %v231 = vld [vmem:[%s212 + $0x28] sm:$0xf]
        %v232 = vld [vmem:[%s212 + $0x2c] sm:$0xf]
        %v233 = vld [vmem:[%s212 + $0x30] sm:$0xf]
        %v234 = vld [vmem:[%s212 + $0x34] sm:$0xf]
        %v235 = vld [vmem:[%s212 + $0x38] sm:$0xf]
        %v236 = vld [vmem:[%s212 + $0x3c] sm:$0xf]
        %v237 = vld [vmem:[%s212 + $0x40] sm:$0xf]
        %v238 = vld [vmem:[%s212 + $0x44] sm:$0xf]
        %v239 = vld [vmem:[%s212 + $0x48] sm:$0xf]
        %v240 = vld [vmem:[%s212 + $0x4c] sm:$0xf]
        %v241 = vld [vmem:[%s212 + $0x50] sm:$0xf]
        %v242 = vld [vmem:[%s212 + $0x54] sm:$0xf]
        %v243 = vld [vmem:[%s212 + $0x58] sm:$0xf]
        %v244 = vld [vmem:[%s212 + $0x5c] sm:$0xf]
        %v245 = vld [vmem:[%s212 + $0x60] sm:$0xf]
        %v246 = vld [vmem:[%s212 + $0x64] sm:$0xf]
        %v247 = vld [vmem:[%s212 + $0x68] sm:$0xf]
        %v248 = vld [vmem:[%s212 + $0x6c] sm:$0xf]
        %v249 = vld [vmem:[%s212 + $0x70] sm:$0xf]
        %v250 = vld [vmem:[%s212 + $0x74] sm:$0xf]
        %v251 = vld [vmem:[%s212 + $0x78] sm:$0xf]
        %v252 = vld [vmem:[%s212 + $0x7c] sm:$0xf]
        %v253 = vld [vmem:[%s1] sm:$0xf]
        %v254 = vld [vmem:[%s1 + $0x4] sm:$0xf]
        %v255 = vld [vmem:[%s1 + $0x8] sm:$0xf]
        %v256 = vld [vmem:[%s1 + $0xc] sm:$0xf]
        %v257 = vld [vmem:[%s1 + $0x10] sm:$0x3]
        %v290 = vunpack.c.l.b16 %v221
        %v291 = vunpack.c.l.b16 %v222
        %v292 = vunpack.c.l.b16 %v223
        %v293 = vunpack.c.l.b16 %v224
        %v294 = vunpack.c.l.b16 %v225
        %v295 = vunpack.c.l.b16 %v226
        %v296 = vunpack.c.l.b16 %v227
        %v297 = vunpack.c.l.b16 %v228
        %v298 = vunpack.c.l.b16 %v229
        %v299 = vunpack.c.l.b16 %v230
        %v300 = vunpack.c.l.b16 %v231
        %v301 = vunpack.c.l.b16 %v232
        %v302 = vunpack.c.l.b16 %v233
        %v303 = vunpack.c.l.b16 %v234
        %v304 = vunpack.c.l.b16 %v235
        %v305 = vunpack.c.l.b16 %v236
        %v306 = vunpack.c.l.b16 %v237
        %v307 = vunpack.c.l.b16 %v238
        %v308 = vunpack.c.l.b16 %v239
        %v309 = vunpack.c.l.b16 %v240
        %v310 = vunpack.c.l.b16 %v241
        %v311 = vunpack.c.l.b16 %v242
        %v312 = vunpack.c.l.b16 %v243
        %v313 = vunpack.c.l.b16 %v244
        %v314 = vunpack.c.l.b16 %v245
        %v315 = vunpack.c.l.b16 %v246
        %v316 = vunpack.c.l.b16 %v247
        %v317 = vunpack.c.l.b16 %v248
        %v318 = vunpack.c.l.b16 %v249
        %v319 = vunpack.c.l.b16 %v250
        %v320 = vunpack.c.l.b16 %v251
        %v321 = vunpack.c.l.b16 %v252
        %v322 = vpack.c.b16 %v291, %v290
        %v323 = vpack.c.b16 %v293, %v292
        %v324 = vpack.c.b16 %v295, %v294
        %v325 = vpack.c.b16 %v297, %v296
        %v326 = vpack.c.b16 %v299, %v298
        %v327 = vpack.c.b16 %v301, %v300
        %v328 = vpack.c.b16 %v303, %v302
        %v329 = vpack.c.b16 %v305, %v304
        %v330 = vpack.c.b16 %v307, %v306
        %v331 = vpack.c.b16 %v309, %v308
        %v332 = vpack.c.b16 %v311, %v310
        %v333 = vpack.c.b16 %v313, %v312
        %v334 = vpack.c.b16 %v315, %v314
        %v335 = vpack.c.b16 %v317, %v316
        %v336 = vpack.c.b16 %v319, %v318
        %v337 = vpack.c.b16 %v321, %v320
        %v343 = vunpack.c.l.b16 %v253
        %v344 = vunpack.c.l.b16 %v254
        %v345 = vunpack.c.l.b16 %v255
        %v346 = vunpack.c.l.b16 %v256
        %v347 = vunpack.c.l.b16 %v257
        %v348 = vpack.c.b16 %v344, %v343
        %v349 = vpack.c.b16 %v346, %v345
        %v350 = vpack.c.b16 %v347, %v347
        %vm353 = vcmask 293888
        %v355 = vsel %vm353, %v322, 0
        %v358 = vsel %vm353, %v323, 0
        %v361 = vsel %vm353, %v324, 0
        %v364 = vsel %vm353, %v325, 0
        %v367 = vsel %vm353, %v326, 0
        %v370 = vsel %vm353, %v327, 0
        %v373 = vsel %vm353, %v328, 0
        %v376 = vsel %vm353, %v329, 0
        %v379 = vsel %vm353, %v330, 0
        %v382 = vsel %vm353, %v331, 0
        %v385 = vsel %vm353, %v332, 0
        %v388 = vsel %vm353, %v333, 0
        %v391 = vsel %vm353, %v334, 0
        %v394 = vsel %vm353, %v335, 0
        %v397 = vsel %vm353, %v336, 0
        %v400 = vsel %vm353, %v337, 0
        %vm402 = vcmask 1041408
        %v404 = vsel %vm402, %v350, 0
        %406 = vmatprep.subr.bf16.mxu0 0
        %407 = vmatpush1.bf16.msra.mxu0 %v348
        %408 = vmatprep.subr.bf16.mxu0 0
        %409 = vmatpush1.bf16.msra.mxu0 %v349
        %410 = vmatprep.subr.bf16.mxu0 0
        %411 = vmatpush1.bf16.msra.mxu0 %v404
        %412 = vmatprep.subr.bf16.mxu0 0
        %413 = vmatpush1.bf16.msra.mxu0 0
        %414 = vmatprep.subr.bf16.mxu0 0
        %415 = vmatpush1.bf16.msra.mxu0 0
        %416 = vmatprep.subr.bf16.mxu0 0
        %417 = vmatpush1.bf16.msra.mxu0 0
        %418 = vmatprep.subr.bf16.mxu0 0
        %419 = vmatpush1.bf16.msra.mxu0 0
        %420 = vmatprep.subr.bf16.mxu0 0
        %421 = vmatpush1.bf16.msra.mxu0 0
        %422 = vmatprep.subr.bf16.mxu0 0
        %423 = vmatpush1.bf16.msra.mxu0 0
        %424 = vmatprep.subr.bf16.mxu0 0
        %425 = vmatpush1.bf16.msra.mxu0 0
        %426 = vmatprep.subr.bf16.mxu0 0
        %427 = vmatpush1.bf16.msra.mxu0 0
        %428 = vmatprep.subr.bf16.mxu0 0
        %429 = vmatpush1.bf16.msra.mxu0 0
        %430 = vmatprep.subr.bf16.mxu0 0
        %431 = vmatpush1.bf16.msra.mxu0 0
        %432 = vmatprep.subr.bf16.mxu0 0
        %433 = vmatpush1.bf16.msra.mxu0 0
        %434 = vmatprep.subr.bf16.mxu0 0
        %435 = vmatpush1.bf16.msra.mxu0 0
        %436 = vmatprep.subr.bf16.mxu0 0
        %437 = vmatpush1.bf16.msra.mxu0 0
        %438 = vmatprep.mubr.bf16.mxu0 0
        %439 = vmatmul.mubr.bf16.gmra.mrb[0].mxu0 %v355
        %v440 = vpop.f32.mrb[0].mxu0
        %v441 = vadd.f32 0.0, %v440
        %v442 = vpop.f32.mrb[0].mxu0
        %v443 = vpop.f32.mrb[0].mxu0
        %v444 = vadd.f32 0.0, %v443
        %v445 = vpop.f32.mrb[0].mxu0
        %446 = vmatprep.mubr.bf16.mxu0 0
        %447 = vmatmul.mubr.bf16.gmra.mrb[0].mxu0 %v358
        %v448 = vpop.f32.mrb[0].mxu0
        %v449 = vadd.f32 0.0, %v448
        %v450 = vpop.f32.mrb[0].mxu0
        %v451 = vpop.f32.mrb[0].mxu0
        %v452 = vadd.f32 0.0, %v451
        %v453 = vpop.f32.mrb[0].mxu0
        %454 = vmatprep.mubr.bf16.mxu0 0
        %455 = vmatmul.mubr.bf16.gmra.mrb[0].mxu0 %v361
        %v456 = vpop.f32.mrb[0].mxu0
        %v457 = vadd.f32 0.0, %v456
        %v458 = vpop.f32.mrb[0].mxu0
        %v459 = vpop.f32.mrb[0].mxu0
        %v460 = vadd.f32 0.0, %v459
        %v461 = vpop.f32.mrb[0].mxu0
        %462 = vmatprep.mubr.bf16.mxu0 0
        %463 = vmatmul.mubr.bf16.gmra.mrb[0].mxu0 %v364
        %v464 = vpop.f32.mrb[0].mxu0
        %v465 = vadd.f32 0.0, %v464
        %v466 = vpop.f32.mrb[0].mxu0
        %v467 = vpop.f32.mrb[0].mxu0
        %v468 = vadd.f32 0.0, %v467
        %v469 = vpop.f32.mrb[0].mxu0
        %470 = vmatprep.mubr.bf16.mxu0 0
        %471 = vmatmul.mubr.bf16.gmra.mrb[0].mxu0 %v367
        %v472 = vpop.f32.mrb[0].mxu0
        %v473 = vadd.f32 0.0, %v472
        %v474 = vpop.f32.mrb[0].mxu0
        %v475 = vpop.f32.mrb[0].mxu0
        %v476 = vadd.f32 0.0, %v475
        %v477 = vpop.f32.mrb[0].mxu0
        %478 = vmatprep.mubr.bf16.mxu0 0
        %479 = vmatmul.mubr.bf16.gmra.mrb[0].mxu0 %v370
        %v480 = vpop.f32.mrb[0].mxu0
        %v481 = vadd.f32 0.0, %v480
        %v482 = vpop.f32.mrb[0].mxu0
        %v483 = vpop.f32.mrb[0].mxu0
        %v484 = vadd.f32 0.0, %v483
        %v485 = vpop.f32.mrb[0].mxu0
        %486 = vmatprep.mubr.bf16.mxu0 0
        %487 = vmatmul.mubr.bf16.gmra.mrb[0].mxu0 %v373
        %v488 = vpop.f32.mrb[0].mxu0
        %v489 = vadd.f32 0.0, %v488
        %v490 = vpop.f32.mrb[0].mxu0
        %v491 = vpop.f32.mrb[0].mxu0
        %v492 = vadd.f32 0.0, %v491
        %v493 = vpop.f32.mrb[0].mxu0
        %494 = vmatprep.mubr.bf16.mxu0 0
        %495 = vmatmul.mubr.bf16.gmra.mrb[0].mxu0 %v376
        %v496 = vpop.f32.mrb[0].mxu0
        %v497 = vadd.f32 0.0, %v496
        %v498 = vpop.f32.mrb[0].mxu0
        %v499 = vpop.f32.mrb[0].mxu0
        %v500 = vadd.f32 0.0, %v499
        %v501 = vpop.f32.mrb[0].mxu0
        %502 = vmatprep.mubr.bf16.mxu0 0
        %503 = vmatmul.mubr.bf16.gmra.mrb[0].mxu0 %v379
        %v504 = vpop.f32.mrb[0].mxu0
        %v505 = vadd.f32 0.0, %v504
        %v506 = vpop.f32.mrb[0].mxu0
        %v507 = vpop.f32.mrb[0].mxu0
        %v508 = vadd.f32 0.0, %v507
        %v509 = vpop.f32.mrb[0].mxu0
        %510 = vmatprep.mubr.bf16.mxu0 0
        %511 = vmatmul.mubr.bf16.gmra.mrb[0].mxu0 %v382
        %v512 = vpop.f32.mrb[0].mxu0
        %v513 = vadd.f32 0.0, %v512
        %v514 = vpop.f32.mrb[0].mxu0
        %v515 = vpop.f32.mrb[0].mxu0
        %v516 = vadd.f32 0.0, %v515
        %v517 = vpop.f32.mrb[0].mxu0
        %518 = vmatprep.mubr.bf16.mxu0 0
        %519 = vmatmul.mubr.bf16.gmra.mrb[0].mxu0 %v385
        %v520 = vpop.f32.mrb[0].mxu0
        %v521 = vadd.f32 0.0, %v520
        %v522 = vpop.f32.mrb[0].mxu0
        %v523 = vpop.f32.mrb[0].mxu0
        %v524 = vadd.f32 0.0, %v523
        %v525 = vpop.f32.mrb[0].mxu0
        %526 = vmatprep.mubr.bf16.mxu0 0
        %527 = vmatmul.mubr.bf16.gmra.mrb[0].mxu0 %v388
        %v528 = vpop.f32.mrb[0].mxu0
        %v529 = vadd.f32 0.0, %v528
        %v530 = vpop.f32.mrb[0].mxu0
        %v531 = vpop.f32.mrb[0].mxu0
        %v532 = vadd.f32 0.0, %v531
        %v533 = vpop.f32.mrb[0].mxu0
        %534 = vmatprep.mubr.bf16.mxu0 0
        %535 = vmatmul.mubr.bf16.gmra.mrb[0].mxu0 %v391
        %v536 = vpop.f32.mrb[0].mxu0
        %v537 = vadd.f32 0.0, %v536
        %v538 = vpop.f32.mrb[0].mxu0
        %v539 = vpop.f32.mrb[0].mxu0
        %v540 = vadd.f32 0.0, %v539
        %v541 = vpop.f32.mrb[0].mxu0
        %542 = vmatprep.mubr.bf16.mxu0 0
        %543 = vmatmul.mubr.bf16.gmra.mrb[0].mxu0 %v394
        %v544 = vpop.f32.mrb[0].mxu0
        %v545 = vadd.f32 0.0, %v544
        %v546 = vpop.f32.mrb[0].mxu0
        %v547 = vpop.f32.mrb[0].mxu0
        %v548 = vadd.f32 0.0, %v547
        %v549 = vpop.f32.mrb[0].mxu0
        %550 = vmatprep.mubr.bf16.mxu0 0
        %551 = vmatmul.mubr.bf16.gmra.mrb[0].mxu0 %v397
        %v552 = vpop.f32.mrb[0].mxu0
        %v553 = vadd.f32 0.0, %v552
        %v554 = vpop.f32.mrb[0].mxu0
        %v555 = vpop.f32.mrb[0].mxu0
        %v556 = vadd.f32 0.0, %v555
        %v557 = vpop.f32.mrb[0].mxu0
        %558 = vmatprep.mubr.bf16.mxu0 0
        %559 = vmatmul.mubr.bf16.gmra.mrb[0].mxu0 %v400
        %v560 = vpop.f32.mrb[0].mxu0
        %v561 = vadd.f32 0.0, %v560
        %v562 = vpop.f32.mrb[0].mxu0
        %v563 = vpop.f32.mrb[0].mxu0
        %v564 = vadd.f32 0.0, %v563
        %v565 = vpop.f32.mrb[0].mxu0
        %566 = vdwg.mxu0
        %v567 = vpack.c.bf16 %v444, %v441
        %v568 = vpack.c.bf16 %v452, %v449
        %v569 = vpack.c.bf16 %v460, %v457
        %v570 = vpack.c.bf16 %v468, %v465
        %v571 = vpack.c.bf16 %v476, %v473
        %v572 = vpack.c.bf16 %v484, %v481
        %v573 = vpack.c.bf16 %v492, %v489
        %v574 = vpack.c.bf16 %v500, %v497
        %v575 = vpack.c.bf16 %v508, %v505
        %v576 = vpack.c.bf16 %v516, %v513
        %v577 = vpack.c.bf16 %v524, %v521
        %v578 = vpack.c.bf16 %v532, %v529
        %v579 = vpack.c.bf16 %v540, %v537
        %v580 = vpack.c.bf16 %v548, %v545
        %v581 = vpack.c.bf16 %v556, %v553
        %v582 = vpack.c.bf16 %v564, %v561
        %v599 = vunpack.c.l.b16 %v567
        %v600 = vunpack.c.h.b16 %v567
        %v601 = vunpack.c.l.b16 %v568
        %v602 = vunpack.c.h.b16 %v568
        %v603 = vunpack.c.l.b16 %v569
        %v604 = vunpack.c.h.b16 %v569
        %v605 = vunpack.c.l.b16 %v570
        %v606 = vunpack.c.h.b16 %v570
        %v607 = vunpack.c.l.b16 %v571
        %v608 = vunpack.c.h.b16 %v571
        %v609 = vunpack.c.l.b16 %v572
        %v610 = vunpack.c.h.b16 %v572
        %v611 = vunpack.c.l.b16 %v573
        %v612 = vunpack.c.h.b16 %v573
        %v613 = vunpack.c.l.b16 %v574
        %v614 = vunpack.c.h.b16 %v574
        %v615 = vunpack.c.l.b16 %v575
        %v616 = vunpack.c.h.b16 %v575
        %v617 = vunpack.c.l.b16 %v576
        %v618 = vunpack.c.h.b16 %v576
        %v619 = vunpack.c.l.b16 %v577
        %v620 = vunpack.c.h.b16 %v577
        %v621 = vunpack.c.l.b16 %v578
        %v622 = vunpack.c.h.b16 %v578
        %v623 = vunpack.c.l.b16 %v579
        %v624 = vunpack.c.h.b16 %v579
        %v625 = vunpack.c.l.b16 %v580
        %v626 = vunpack.c.h.b16 %v580
        %v627 = vunpack.c.l.b16 %v581
        %v628 = vunpack.c.h.b16 %v581
        %v629 = vunpack.c.l.b16 %v582
        %v630 = vunpack.c.h.b16 %v582
        %v631 = vpack.c.b16 %v599, %v599
        %v632 = vpack.c.b16 %v600, %v600
        %v633 = vpack.c.b16 %v601, %v601
        %v634 = vpack.c.b16 %v602, %v602
        %v635 = vpack.c.b16 %v603, %v603
        %v636 = vpack.c.b16 %v604, %v604
        %v637 = vpack.c.b16 %v605, %v605
        %v638 = vpack.c.b16 %v606, %v606
        %v639 = vpack.c.b16 %v607, %v607
        %v640 = vpack.c.b16 %v608, %v608
        %v641 = vpack.c.b16 %v609, %v609
        %v642 = vpack.c.b16 %v610, %v610
        %v643 = vpack.c.b16 %v611, %v611
        %v644 = vpack.c.b16 %v612, %v612
        %v645 = vpack.c.b16 %v613, %v613
        %v646 = vpack.c.b16 %v614, %v614
        %v647 = vpack.c.b16 %v615, %v615
        %v648 = vpack.c.b16 %v616, %v616
        %v649 = vpack.c.b16 %v617, %v617
        %v650 = vpack.c.b16 %v618, %v618
        %v651 = vpack.c.b16 %v619, %v619
        %v652 = vpack.c.b16 %v620, %v620
        %v653 = vpack.c.b16 %v621, %v621
        %v654 = vpack.c.b16 %v622, %v622
        %v655 = vpack.c.b16 %v623, %v623
        %v656 = vpack.c.b16 %v624, %v624
        %v657 = vpack.c.b16 %v625, %v625
        %v658 = vpack.c.b16 %v626, %v626
        %v659 = vpack.c.b16 %v627, %v627
        %v660 = vpack.c.b16 %v628, %v628
        %v661 = vpack.c.b16 %v629, %v629
        %v662 = vpack.c.b16 %v630, %v630
        %vm695 = vcmask 519168
        %696 = vst.msk [vmem:[%s218] sm:$0xf] %vm695, %v631
        %697 = vst.msk [vmem:[%s218 + $0x4] sm:$0xf] %vm695, %v632
        %698 = vst.msk [vmem:[%s218 + $0x8] sm:$0xf] %vm695, %v633
        %699 = vst.msk [vmem:[%s218 + $0xc] sm:$0xf] %vm695, %v634
        %700 = vst.msk [vmem:[%s218 + $0x10] sm:$0xf] %vm695, %v635
        %701 = vst.msk [vmem:[%s218 + $0x14] sm:$0xf] %vm695, %v636
        %702 = vst.msk [vmem:[%s218 + $0x18] sm:$0xf] %vm695, %v637
        %703 = vst.msk [vmem:[%s218 + $0x1c] sm:$0xf] %vm695, %v638
        %704 = vst.msk [vmem:[%s218 + $0x20] sm:$0xf] %vm695, %v639
        %705 = vst.msk [vmem:[%s218 + $0x24] sm:$0xf] %vm695, %v640
        %706 = vst.msk [vmem:[%s218 + $0x28] sm:$0xf] %vm695, %v641
        %707 = vst.msk [vmem:[%s218 + $0x2c] sm:$0xf] %vm695, %v642
        %708 = vst.msk [vmem:[%s218 + $0x30] sm:$0xf] %vm695, %v643
        %709 = vst.msk [vmem:[%s218 + $0x34] sm:$0xf] %vm695, %v644
        %710 = vst.msk [vmem:[%s218 + $0x38] sm:$0xf] %vm695, %v645
        %711 = vst.msk [vmem:[%s218 + $0x3c] sm:$0xf] %vm695, %v646
        %712 = vst.msk [vmem:[%s218 + $0x40] sm:$0xf] %vm695, %v647
        %713 = vst.msk [vmem:[%s218 + $0x44] sm:$0xf] %vm695, %v648
        %714 = vst.msk [vmem:[%s218 + $0x48] sm:$0xf] %vm695, %v649
        %715 = vst.msk [vmem:[%s218 + $0x4c] sm:$0xf] %vm695, %v650
        %716 = vst.msk [vmem:[%s218 + $0x50] sm:$0xf] %vm695, %v651
        %717 = vst.msk [vmem:[%s218 + $0x54] sm:$0xf] %vm695, %v652
        %718 = vst.msk [vmem:[%s218 + $0x58] sm:$0xf] %vm695, %v653
        %719 = vst.msk [vmem:[%s218 + $0x5c] sm:$0xf] %vm695, %v654
        %720 = vst.msk [vmem:[%s218 + $0x60] sm:$0xf] %vm695, %v655
        %721 = vst.msk [vmem:[%s218 + $0x64] sm:$0xf] %vm695, %v656
        %722 = vst.msk [vmem:[%s218 + $0x68] sm:$0xf] %vm695, %v657
        %723 = vst.msk [vmem:[%s218 + $0x6c] sm:$0xf] %vm695, %v658
        %724 = vst.msk [vmem:[%s218 + $0x70] sm:$0xf] %vm695, %v659
        %725 = vst.msk [vmem:[%s218 + $0x74] sm:$0xf] %vm695, %v660
        %726 = vst.msk [vmem:[%s218 + $0x78] sm:$0xf] %vm695, %v661
        %727 = vst.msk [vmem:[%s218 + $0x7c] sm:$0xf] %vm695, %v662
        %vm728 = vcmask 523264
        %v729 = vsel %vm728, %v441, 0.0
        %v730 = vsel %vm728, %v444, 0.0
        %v731 = vadd.f32 %v729, %v730
        %v732 = vsel %vm728, %v449, 0.0
        %v733 = vadd.f32 %v731, %v732
        %v734 = vsel %vm728, %v452, 0.0
        %v735 = vadd.f32 %v733, %v734
        %v736 = vsel %vm728, %v457, 0.0
        %v737 = vadd.f32 %v735, %v736
        %v738 = vsel %vm728, %v460, 0.0
        %v739 = vadd.f32 %v737, %v738
        %v740 = vsel %vm728, %v465, 0.0
        %v741 = vadd.f32 %v739, %v740
        %v742 = vsel %vm728, %v468, 0.0
        %v743 = vadd.f32 %v741, %v742
        %v744 = vsel %vm728, %v473, 0.0
        %v745 = vadd.f32 %v743, %v744
        %v746 = vsel %vm728, %v476, 0.0
        %v747 = vadd.f32 %v745, %v746
        %v748 = vsel %vm728, %v481, 0.0
        %v749 = vadd.f32 %v747, %v748
        %v750 = vsel %vm728, %v484, 0.0
        %v751 = vadd.f32 %v749, %v750
        %v752 = vsel %vm728, %v489, 0.0
        %v753 = vadd.f32 %v751, %v752
        %v754 = vsel %vm728, %v492, 0.0
        %v755 = vadd.f32 %v753, %v754
        %v756 = vsel %vm728, %v497, 0.0
        %v757 = vadd.f32 %v755, %v756
        %v758 = vsel %vm728, %v500, 0.0
        %v759 = vadd.f32 %v757, %v758
        %v760 = vsel %vm728, %v505, 0.0
        %v761 = vadd.f32 %v759, %v760
        %v762 = vsel %vm728, %v508, 0.0
        %v763 = vadd.f32 %v761, %v762
        %v764 = vsel %vm728, %v513, 0.0
        %v765 = vadd.f32 %v763, %v764
        %v766 = vsel %vm728, %v516, 0.0
        %v767 = vadd.f32 %v765, %v766
        %v768 = vsel %vm728, %v521, 0.0
        %v769 = vadd.f32 %v767, %v768
        %v770 = vsel %vm728, %v524, 0.0
        %v771 = vadd.f32 %v769, %v770
        %v772 = vsel %vm728, %v529, 0.0
        %v773 = vadd.f32 %v771, %v772
        %v774 = vsel %vm728, %v532, 0.0
        %v775 = vadd.f32 %v773, %v774
        %v776 = vsel %vm728, %v537, 0.0
        %v777 = vadd.f32 %v775, %v776
        %v778 = vsel %vm728, %v540, 0.0
        %v779 = vadd.f32 %v777, %v778
        %v780 = vsel %vm728, %v545, 0.0
        %v781 = vadd.f32 %v779, %v780
        %v782 = vsel %vm728, %v548, 0.0
        %v783 = vadd.f32 %v781, %v782
        %v784 = vsel %vm728, %v553, 0.0
        %v785 = vadd.f32 %v783, %v784
        %v786 = vsel %vm728, %v556, 0.0
        %v787 = vadd.f32 %v785, %v786
        %v788 = vsel %vm728, %v561, 0.0
        %v789 = vadd.f32 %v787, %v788
        %v790 = vsel %vm728, %v564, 0.0
        %v791 = vadd.f32 %v789, %v790
        %v792 = vrot.slane %v791, 4
        %v793 = vadd.f32 %v791, %v792
        %v794 = vrot.slane %v793, 2
        %v795 = vadd.f32 %v793, %v794
        %v796 = vrot.slane %v795, 1
        %v797 = vadd.f32 %v795, %v796
        %vm798 = vcmask 516096
        %799 = vst.msk [vmem:[%s201] sm:$0x1] %vm798, %v797
        %v800 = vmul.f32 %v441, %v441
        %v801 = vmul.f32 %v444, %v444
        %v802 = vmul.f32 %v449, %v449
        %v803 = vmul.f32 %v452, %v452
        %v804 = vmul.f32 %v457, %v457
        %v805 = vmul.f32 %v460, %v460
        %v806 = vmul.f32 %v465, %v465
        %v807 = vmul.f32 %v468, %v468
        %v808 = vmul.f32 %v473, %v473
        %v809 = vmul.f32 %v476, %v476
        %v810 = vmul.f32 %v481, %v481
        %v811 = vmul.f32 %v484, %v484
        %v812 = vmul.f32 %v489, %v489
        %v813 = vmul.f32 %v492, %v492
        %v814 = vmul.f32 %v497, %v497
        %v815 = vmul.f32 %v500, %v500
        %v816 = vmul.f32 %v505, %v505
        %v817 = vmul.f32 %v508, %v508
        %v818 = vmul.f32 %v513, %v513
        %v819 = vmul.f32 %v516, %v516
        %v820 = vmul.f32 %v521, %v521
        %v821 = vmul.f32 %v524, %v524
        %v822 = vmul.f32 %v529, %v529
        %v823 = vmul.f32 %v532, %v532
        %v824 = vmul.f32 %v537, %v537
        %v825 = vmul.f32 %v540, %v540
        %v826 = vmul.f32 %v545, %v545
        %v827 = vmul.f32 %v548, %v548
        %v828 = vmul.f32 %v553, %v553
        %v829 = vmul.f32 %v556, %v556
        %v830 = vmul.f32 %v561, %v561
        %v831 = vmul.f32 %v564, %v564
        %v832 = vsel %vm728, %v800, 0.0
        %v833 = vsel %vm728, %v801, 0.0
        %v834 = vadd.f32 %v832, %v833
        %v835 = vsel %vm728, %v802, 0.0
        %v836 = vadd.f32 %v834, %v835
        %v837 = vsel %vm728, %v803, 0.0
        %v838 = vadd.f32 %v836, %v837
        %v839 = vsel %vm728, %v804, 0.0
        %v840 = vadd.f32 %v838, %v839
        %v841 = vsel %vm728, %v805, 0.0
        %v842 = vadd.f32 %v840, %v841
        %v843 = vsel %vm728, %v806, 0.0
        %v844 = vadd.f32 %v842, %v843
        %v845 = vsel %vm728, %v807, 0.0
        %v846 = vadd.f32 %v844, %v845
        %v847 = vsel %vm728, %v808, 0.0
        %v848 = vadd.f32 %v846, %v847
        %v849 = vsel %vm728, %v809, 0.0
        %v850 = vadd.f32 %v848, %v849
        %v851 = vsel %vm728, %v810, 0.0
        %v852 = vadd.f32 %v850, %v851
        %v853 = vsel %vm728, %v811, 0.0
        %v854 = vadd.f32 %v852, %v853
        %v855 = vsel %vm728, %v812, 0.0
        %v856 = vadd.f32 %v854, %v855
        %v857 = vsel %vm728, %v813, 0.0
        %v858 = vadd.f32 %v856, %v857
        %v859 = vsel %vm728, %v814, 0.0
        %v860 = vadd.f32 %v858, %v859
        %v861 = vsel %vm728, %v815, 0.0
        %v862 = vadd.f32 %v860, %v861
        %v863 = vsel %vm728, %v816, 0.0
        %v864 = vadd.f32 %v862, %v863
        %v865 = vsel %vm728, %v817, 0.0
        %v866 = vadd.f32 %v864, %v865
        %v867 = vsel %vm728, %v818, 0.0
        %v868 = vadd.f32 %v866, %v867
        %v869 = vsel %vm728, %v819, 0.0
        %v870 = vadd.f32 %v868, %v869
        %v871 = vsel %vm728, %v820, 0.0
        %v872 = vadd.f32 %v870, %v871
        %v873 = vsel %vm728, %v821, 0.0
        %v874 = vadd.f32 %v872, %v873
        %v875 = vsel %vm728, %v822, 0.0
        %v876 = vadd.f32 %v874, %v875
        %v877 = vsel %vm728, %v823, 0.0
        %v878 = vadd.f32 %v876, %v877
        %v879 = vsel %vm728, %v824, 0.0
        %v880 = vadd.f32 %v878, %v879
        %v881 = vsel %vm728, %v825, 0.0
        %v882 = vadd.f32 %v880, %v881
        %v883 = vsel %vm728, %v826, 0.0
        %v884 = vadd.f32 %v882, %v883
        %v885 = vsel %vm728, %v827, 0.0
        %v886 = vadd.f32 %v884, %v885
        %v887 = vsel %vm728, %v828, 0.0
        %v888 = vadd.f32 %v886, %v887
        %v889 = vsel %vm728, %v829, 0.0
        %v890 = vadd.f32 %v888, %v889
        %v891 = vsel %vm728, %v830, 0.0
        %v892 = vadd.f32 %v890, %v891
        %v893 = vsel %vm728, %v831, 0.0
        %v894 = vadd.f32 %v892, %v893
        %v895 = vrot.slane %v894, 4
        %v896 = vadd.f32 %v894, %v895
        %v897 = vrot.slane %v896, 2
        %v898 = vadd.f32 %v896, %v897
        %v899 = vrot.slane %v898, 1
        %v900 = vadd.f32 %v898, %v899
        %901 = vst.msk [vmem:[%s207] sm:$0x1] %vm798, %v900
        %s902 = smul.u32 32, %s22
        %p903 = scmp.lt.s32.totalorder %s902, 63
        %s904 = scalar_select %p903, %s902, 63
        %s905 = smul.addr %s904, 4
        %s906 = scalar_lea.vmem %s2, %s905
        %s907 = sand.u32 %s103, 1
        %s908 = scalar_lea.sflag [#allocation3], %s907
        %s909 = sand.u32 %s103, 1
        %s910 = scalar_lea.vmem [#allocation2], %s909
        %s911 = sand.u32 %s129, 1
        %s912 = scalar_lea.sflag [#allocation5], %s911
        %s913 = sand.u32 %s129, 1
        %s914 = scalar_lea.vmem [#allocation4], %s913
        // Predicated region
        $region29: #{tpu_custom_call.1} parent=27 // pred_check
          %p915 = pneg %p87
        $region30: #{tpu_custom_call.1} parent=27 // pred_check_branch
          %917 = sbr.rel (%p915) target = $region32
        $region31: #{tpu_custom_call.1} parent=27 // pred_region
          %s918 = smul.u32 32, %s22
        $region32: #{tpu_custom_call.1} parent=27 // pred_fallthru
          _
        // Predicated region
        $region33: #{tpu_custom_call.1} parent=27 // pred_check
          %p919 = pneg %p113
        $region34: #{tpu_custom_call.1} parent=27 // pred_check_branch
          %921 = sbr.rel (%p919) target = $region36
        $region35: #{tpu_custom_call.1} parent=27 // pred_region
          %s923 = ssub.s32 16, 16
          %924 = vsyncadd %s908, %s923
          %s925 = smul.addr %s22, 16
          %s926 = scalar_lea.hbm %s3, %s925
          %s928 = sshll.u32 %s910, 4
          %s929 = int_to_ptr.vmem [resolvable:$true] %s928
          %931 = dma.vmem_to_hbm [thread:$0]  %s929, 16, %s926, %s908
        $region36: #{tpu_custom_call.1} parent=27 // pred_fallthru
          _
        // Predicated region
        $region37: #{tpu_custom_call.1} parent=27 // pred_check
          %p932 = pneg %p139
        $region38: #{tpu_custom_call.1} parent=27 // pred_check_branch
          %934 = sbr.rel (%p932) target = $region40
        $region39: #{tpu_custom_call.1} parent=27 // pred_region
          %s936 = ssub.s32 16, 16
          %937 = vsyncadd %s912, %s936
          %s938 = smul.addr %s22, 16
          %s939 = scalar_lea.hbm %s4, %s938
          %s941 = sshll.u32 %s914, 4
          %s942 = int_to_ptr.vmem [resolvable:$true] %s941
          %944 = dma.vmem_to_hbm [thread:$0]  %s942, 16, %s939, %s912
        $region40: #{tpu_custom_call.1} parent=27 // pred_fallthru
          _
      $region28: #{tpu_custom_call.1} parent=5 // pred_fallthru
        _
      %p945 = scmp.le.s32.totalorder 2, %s17
      // Predicated region
      $region41: #{tpu_custom_call.1} parent=5 // pred_check
        %p946 = pneg %p945
      $region42: #{tpu_custom_call.1} parent=5 // pred_check_branch
        %948 = sbr.rel (%p946) target = $region44
      $region43: #{tpu_custom_call.1} parent=5 // pred_region
        %s949 = ssub.s32 %s17, 2
        // Predicated region
        $region45: #{tpu_custom_call.1} parent=43 // pred_check
          %p950 = pneg %p93
        $region46: #{tpu_custom_call.1} parent=43 // pred_check_branch
          %952 = sbr.rel (%p950) target = $region48
        $region47: #{tpu_custom_call.1} parent=43 // pred_region
          %s953 = smul.u32 32, %s23
          %p954 = scmp.lt.s32.totalorder %s953, 63
          %s955 = scalar_select %p954, %s953, 63
          %s956 = smul.addr %s955, 4
          %s957 = scalar_lea.vmem %s2, %s956
        $region48: #{tpu_custom_call.1} parent=43 // pred_fallthru
          _
        // Predicated region
        $region49: #{tpu_custom_call.1} parent=43 // pred_check
          %p958 = pneg %p119
        $region50: #{tpu_custom_call.1} parent=43 // pred_check_branch
          %960 = sbr.rel (%p958) target = $region52
        $region51: #{tpu_custom_call.1} parent=43 // pred_region
          %s961 = sand.u32 %s104, 1
          %s962 = scalar_lea.sflag [#allocation3], %s961
          %s963 = sand.u32 %s104, 1
          %s964 = scalar_lea.vmem [#allocation2], %s963
          %965 = dma.done %s962, 16
        $region52: #{tpu_custom_call.1} parent=43 // pred_fallthru
          _
        // Predicated region
        $region53: #{tpu_custom_call.1} parent=43 // pred_check
          %p966 = pneg %p145
        $region54: #{tpu_custom_call.1} parent=43 // pred_check_branch
          %968 = sbr.rel (%p966) target = $region56
        $region55: #{tpu_custom_call.1} parent=43 // pred_region
          %s969 = sand.u32 %s130, 1
          %s970 = scalar_lea.sflag [#allocation5], %s969
          %s971 = sand.u32 %s130, 1
          %s972 = scalar_lea.vmem [#allocation4], %s971
          %973 = dma.done %s970, 16
        $region56: #{tpu_custom_call.1} parent=43 // pred_fallthru
          _
      $region44: #{tpu_custom_call.1} parent=5 // pred_fallthru
        _
    $region6: #{tpu_custom_call.1} parent=1 // loop_footer
      %s21 = sadd.s32 1, %s17
    $region7: #{tpu_custom_call.1} parent=1 // loop_footer_branch
      %16 = sbr.rel target = $region3
    $region8: #{tpu_custom_call.1} parent=1 // loop_exit
      _
    %974 = vsyncpa [#allocation3], 1
    %s975 = scalar_lea.sflag [#allocation3], 1
    %976 = vsyncpa %s975, 1
    %977 = vsyncpa [#allocation5], 1
    %s978 = scalar_lea.sflag [#allocation5], 1
    %979 = vsyncpa %s978, 1

</llo_original>
